<compile_context>
chip_gen: v5e
topology: v5e:2x2
jax: 0.10.0
libtpu: 0.0.40
codegen_flags: <defaults>
</compile_context>

<pallas_src>
import functools

import jax
import jax.numpy as jnp
from jax.experimental import pallas as pl
from jax.experimental.pallas import tpu as pltpu


def _mlp_kernel(num_layers, compute_dtype, *refs):
    """refs = (x_ref, w0_ref, b0_ref, w1_ref, b1_ref, ..., o_ref).

    Packed weights are (pack*in, pack*out); biases are (1, pack*out).
    Whole MLP fused: matmul chain on the MXU (compute_dtype inputs, f32
    accumulation), bias + ReLU in f32 on the VPU.
    """
    x_ref = refs[0]
    o_ref = refs[-1]
    wb = refs[1:-1]

    h = x_ref[...].astype(compute_dtype)
    for i in range(num_layers):
        w = wb[2 * i][...].astype(compute_dtype)
        b = wb[2 * i + 1][...]                       # f32 bias
        h = jnp.dot(h, w, preferred_element_type=jnp.float32) + b
        if i < num_layers - 1:
            h = jnp.maximum(h, 0.0).astype(compute_dtype)   # ReLU between layers
    o_ref[...] = h.astype(o_ref.dtype)


def _default_pack(widths):
    """Token-packing factor so packed matmul dims roughly match the MXU width
    (128 on v5*, 256 on v6e/v7x)."""
    try:
        kind = jax.devices()[0].device_kind.lower()
    except Exception:  # pragma: no cover - no devices at trace time
        kind = ""
    mxu = 128 if "v5" in kind else 256
    widest = max(int(d) for d in widths)
    return max(1, mxu // widest)


def prepare_mlp_params(weights, biases, *, pack=None):
    """One-time parameter prep (hoisted out of the per-call wrapper).

    weights[i]: (out_i, in_i)   (PyTorch nn.Linear convention)
    biases[i]:  (out_i,)

    Builds block-diagonal packed weights blockdiag(W.T x pack) and pack-tiled
    biases so `pack` consecutive tokens share one lane-dense row.
    Returns (params, meta) with params = [(W_bd(in*p, out*p), b(1, out*p))...].
    """
    num_layers = len(weights)
    assert len(biases) == num_layers
    layer_dims = [(int(w.shape[1]), int(w.shape[0])) for w in weights]  # (in, out)
    if pack is None:
        pack = _default_pack([d for io in layer_dims for d in io])
    pack = max(1, int(pack))

    eye = jnp.eye(pack, dtype=jnp.float32) if pack > 1 else None
    params = []
    for w, b in zip(weights, biases):
        wt = jnp.asarray(w, jnp.float32).T            # (in, out)
        bv = jnp.asarray(b, jnp.float32).reshape(-1)  # (out,)
        if pack > 1:
            wt = jnp.kron(eye, wt)                    # blockdiag(W.T, ..., W.T)
            bv = jnp.tile(bv, pack)
        params.append((wt, bv.reshape(1, -1)))

    meta = {
        "pack": pack,
        "in_dim": layer_dims[0][0],
        "out_dim": layer_dims[-1][1],
        "layer_dims": layer_dims,
    }
    return params, meta


def _pick_tile_m(rows8, requested):
    """rows8: packed-row count rounded up to a multiple of 8.

    Returns a row tile (multiple of 8).  Prefers a single step for small
    inputs, divisors of rows8 (no padded-row copy), and an even step count
    (v7x has 2 TensorCores sharing the "parallel" grid axis).
    """
    req = max(8, (requested // 8) * 8)
    if rows8 <= req:
        # Split a sizable single-step tile in two so both v7x cores work.
        if rows8 >= 512 and (rows8 // 2) % 8 == 0:
            return rows8 // 2
        return rows8
    best = None        # largest multiple-of-8 divisor <= req
    best_even = None   # largest such divisor with an even step count
    t = req
    while t >= 8:
        if rows8 % t == 0:
            if best is None:
                best = t
            if (rows8 // t) % 2 == 0:
                best_even = t
                break
        t -= 8
    if best_even is not None and (best is None or 2 * best_even >= best):
        return best_even
    if best is not None:
        return best
    return req   # no divisor: caller pads < req rows


def mlp_pallas(x, params, meta, *, tile_m=1024, use_bf16=True):
    """Apply the prepared MLP to x of shape (..., input_dim)."""
    pack = meta["pack"]
    in_dim = meta["in_dim"]
    out_dim = meta["out_dim"]
    num_layers = len(params)

    assert x.shape[-1] == in_dim
    lead = x.shape[:-1]
    m = 1
    for d in lead:
        m *= d
    x2 = x.reshape(m, in_dim)

    packed_in = pack * in_dim
    packed_out = int(params[-1][0].shape[1])          # pack * out_dim

    # Packed-row geometry: `pack` consecutive tokens per lane-dense row.
    rows_min = -(-m // pack)
    rows8 = -(-rows_min // 8) * 8

    # Conservative VMEM cap on the row tile (stays well inside the default
    # scoped-VMEM limit even on v5e; weights/biases are VMEM-resident).
    widest = max(int(w.shape[1]) for w, _ in params)
    params_bytes = sum(int(w.size) + int(b.size) for w, b in params) * 4
    per_row_bytes = 4 * (2 * packed_in + 2 * packed_out + 2 * widest)
    budget = 12 * 1024 * 1024 - 2 * params_bytes
    tm_req = max(8, (tile_m // 8) * 8)
    while tm_req > 8 and tm_req * per_row_bytes > budget:
        tm_req //= 2
    tm_req = max(8, (tm_req // 8) * 8)

    tm = _pick_tile_m(rows8, tm_req)
    rows_pad = -(-rows8 // tm) * tm
    m_tok_pad = rows_pad * pack
    if m_tok_pad != m:
        # Padded tokens occupy their own lane blocks (block-diagonal weights),
        # so garbage never contaminates real tokens; sliced off below.
        x2 = jnp.pad(x2, ((0, m_tok_pad - m), (0, 0)))
    xp = x2.reshape(rows_pad, packed_in)              # contiguous -> free

    in_specs = [pl.BlockSpec((tm, packed_in), lambda i: (i, 0))]
    flat_params = []
    for w, b in params:
        flat_params.extend([w, b])
        # Full-array blocks with constant index maps: resident in VMEM,
        # never re-fetched across grid steps.
        in_specs.append(pl.BlockSpec(tuple(w.shape), lambda i: (0, 0)))
        in_specs.append(pl.BlockSpec(tuple(b.shape), lambda i: (0, 0)))

    # Advisory cost estimate (true, unpadded work).
    flops = 2 * m * sum(i * o for i, o in meta["layer_dims"])
    bytes_accessed = (int(x.dtype.itemsize) * m_tok_pad * in_dim
                      + 4 * rows_pad * packed_out + params_bytes)

    compute_dtype = jnp.bfloat16 if use_bf16 else jnp.float32
    kernel = functools.partial(_mlp_kernel, num_layers, compute_dtype)

    out = pl.pallas_call(
        kernel,
        out_shape=jax.ShapeDtypeStruct((rows_pad, packed_out), x.dtype),
        grid=(rows_pad // tm,),
        in_specs=in_specs,
        out_specs=pl.BlockSpec((tm, packed_out), lambda i: (i, 0)),
        compiler_params=pltpu.CompilerParams(
            dimension_semantics=("parallel",)),
        cost_estimate=pl.CostEstimate(
            flops=flops, transcendentals=0, bytes_accessed=bytes_accessed),
    )(xp, *flat_params)

    # Unpack: (rows_pad, pack*out_dim) -> (tokens, out_dim); contiguous reshape.
    out = out.reshape(rows_pad * pack, out_dim)
    if m_tok_pad != m:
        out = out[:m]
    return out.reshape(*lead, out_dim)


def _init_mlp_params(key, input_dim, hidden_dim, output_dim, num_layers):
    """Deterministic nn.Linear-style init (uniform in +-1/sqrt(fan_in))."""
    h = [hidden_dim] * (num_layers - 1)
    dims_in = [input_dim] + h
    dims_out = h + [output_dim]
    weights, biases = [], []
    for n, k_out in zip(dims_in, dims_out):
        key, kw, kb = jax.random.split(key, 3)
        bound = 1.0 / (n ** 0.5)
        weights.append(
            jax.random.uniform(kw, (k_out, n), jnp.float32, -bound, bound))
        biases.append(
            jax.random.uniform(kb, (k_out,), jnp.float32, -bound, bound))
    return weights, biases


def _mlp_ref(x, weights, biases):
    """Pure-JAX reference matching the PyTorch forward (full f32 matmuls)."""
    h = x
    n = len(weights)
    for i, (w, b) in enumerate(zip(weights, biases)):
        h = jnp.dot(h, w.T, precision=jax.lax.Precision.HIGHEST) + b
        if i < n - 1:
            h = jnp.maximum(h, 0.0)
    return h


if __name__ == "__main__":
    # ViDT bbox-head style MLP: MLP(32, 32, 4, 3), applied tokenwise.
    input_dim, hidden_dim, output_dim, num_layers = 32, 32, 4, 3

    key = jax.random.PRNGKey(0)
    key, kx1, kx2 = jax.random.split(key, 3)
    weights, biases = _init_mlp_params(
        key, input_dim, hidden_dim, output_dim, num_layers)

    # One-time parameter preparation (transpose + block-diagonal token packing).
    params, meta = prepare_mlp_params(weights, biases)

    # Small shape (single grid step).
    x_small = jax.random.normal(kx1, (2, 8, input_dim), jnp.float32)
    ref_small = _mlp_ref(x_small, weights, biases)

    # f32 compute path: near-exact vs full-precision reference.
    out_f32 = jax.block_until_ready(
        mlp_pallas(x_small, params, meta, use_bf16=False))
    assert out_f32.shape == (2, 8, output_dim), out_f32.shape
    err = float(jnp.max(jnp.abs(out_f32 - ref_small)))
    assert err < 2e-2, err

    # Default bf16-input path (f32 accumulation): tolerance-based check.
    out_small = jax.block_until_ready(mlp_pallas(x_small, params, meta))
    err = float(jnp.max(jnp.abs(out_small - ref_small)))
    assert err < 1.5e-1, err

    # Medium shape (token count not a multiple of pack*8 -> padded rows).
    x_med = jax.random.normal(kx2, (2, 300, input_dim), jnp.float32)
    ref_med = _mlp_ref(x_med, weights, biases)
    out_med = jax.block_until_ready(mlp_pallas(x_med, params, meta))
    assert out_med.shape == (2, 300, output_dim), out_med.shape
    err = float(jnp.max(jnp.abs(out_med - ref_med)))
    assert err < 1.5e-1, err

    out_med_f32 = jax.block_until_ready(
        mlp_pallas(x_med, params, meta, use_bf16=False))
    err = float(jnp.max(jnp.abs(out_med_f32 - ref_med)))
    assert err < 2e-2, err

    print("KERNEL_OK")
</pallas_src>

<mosaic_0001>
module attributes {stable_mosaic.version = 11 : i64} {
  func.func @_mlp_kernel(%arg0: i32, %arg1: memref<8x256xf32, #tpu.memory_space<vmem>>, %arg2: memref<256x256xf32, #tpu.memory_space<vmem>>, %arg3: memref<1x256xf32, #tpu.memory_space<vmem>>, %arg4: memref<256x256xf32, #tpu.memory_space<vmem>>, %arg5: memref<1x256xf32, #tpu.memory_space<vmem>>, %arg6: memref<256x32xf32, #tpu.memory_space<vmem>>, %arg7: memref<1x32xf32, #tpu.memory_space<vmem>>, %arg8: memref<8x32xf32, #tpu.memory_space<vmem>>) attributes {dimension_semantics = [#tpu.dimension_semantics<parallel>], iteration_bounds = array<i64: 1>, scalar_prefetch = 0 : i64, scratch_operands = 0 : i64, tpu.core_type = #tpu.core_type<tc>, window_params = [{transform_indices = @transform_0, window_bounds = array<i64: 8, 256>}, {pipeline_mode = #tpu.pipeline_mode<synchronous>, transform_indices = @transform_1, window_bounds = array<i64: 256, 256>}, {pipeline_mode = #tpu.pipeline_mode<synchronous>, transform_indices = @transform_2, window_bounds = array<i64: 1, 256>}, {pipeline_mode = #tpu.pipeline_mode<synchronous>, transform_indices = @transform_3, window_bounds = array<i64: 256, 256>}, {pipeline_mode = #tpu.pipeline_mode<synchronous>, transform_indices = @transform_4, window_bounds = array<i64: 1, 256>}, {pipeline_mode = #tpu.pipeline_mode<synchronous>, transform_indices = @transform_5, window_bounds = array<i64: 256, 32>}, {pipeline_mode = #tpu.pipeline_mode<synchronous>, transform_indices = @transform_6, window_bounds = array<i64: 1, 32>}, {transform_indices = @transform_7, window_bounds = array<i64: 8, 32>}]} {
    %c0 = arith.constant 0 : index
    %c0_0 = arith.constant 0 : index
    %0 = vector.load %arg1[%c0, %c0_0] : memref<8x256xf32, #tpu.memory_space<vmem>>, vector<8x256xf32>
    %c0_1 = arith.constant 0 : index
    %c0_2 = arith.constant 0 : index
    %1 = vector.load %arg2[%c0_1, %c0_2] : memref<256x256xf32, #tpu.memory_space<vmem>>, vector<256x256xf32>
    %c0_3 = arith.constant 0 : index
    %c0_4 = arith.constant 0 : index
    %2 = vector.load %arg3[%c0_3, %c0_4] : memref<1x256xf32, #tpu.memory_space<vmem>>, vector<1x256xf32>
    %cst = arith.constant dense<0.000000e+00> : vector<8x256xf32>
    %3 = tpu.matmul %0, %1, %cst {dimension_numbers = #tpu.dot_dimension_numbers<[1], [0], [0], [1], [0, 0, 1, 1], [], []>} : vector<8x256xf32>, vector<256x256xf32>, vector<8x256xf32> -> vector<8x256xf32>
    %4 = vector.broadcast %2 : vector<1x256xf32> to vector<8x256xf32>
    %5 = arith.addf %3, %4 : vector<8x256xf32>
    %cst_5 = arith.constant 0.000000e+00 : f32
    %6 = vector.broadcast %cst_5 : f32 to vector<8x256xf32>
    %7 = arith.maximumf %5, %6 : vector<8x256xf32>
    %c0_6 = arith.constant 0 : index
    %c0_7 = arith.constant 0 : index
    %8 = vector.load %arg4[%c0_6, %c0_7] : memref<256x256xf32, #tpu.memory_space<vmem>>, vector<256x256xf32>
    %c0_8 = arith.constant 0 : index
    %c0_9 = arith.constant 0 : index
    %9 = vector.load %arg5[%c0_8, %c0_9] : memref<1x256xf32, #tpu.memory_space<vmem>>, vector<1x256xf32>
    %cst_10 = arith.constant dense<0.000000e+00> : vector<8x256xf32>
    %10 = tpu.matmul %7, %8, %cst_10 {dimension_numbers = #tpu.dot_dimension_numbers<[1], [0], [0], [1], [0, 0, 1, 1], [], []>} : vector<8x256xf32>, vector<256x256xf32>, vector<8x256xf32> -> vector<8x256xf32>
    %11 = vector.broadcast %9 : vector<1x256xf32> to vector<8x256xf32>
    %12 = arith.addf %10, %11 : vector<8x256xf32>
    %cst_11 = arith.constant 0.000000e+00 : f32
    %13 = vector.broadcast %cst_11 : f32 to vector<8x256xf32>
    %14 = arith.maximumf %12, %13 : vector<8x256xf32>
    %c0_12 = arith.constant 0 : index
    %c0_13 = arith.constant 0 : index
    %15 = vector.load %arg6[%c0_12, %c0_13] : memref<256x32xf32, #tpu.memory_space<vmem>>, vector<256x32xf32>
    %c0_14 = arith.constant 0 : index
    %c0_15 = arith.constant 0 : index
    %16 = vector.load %arg7[%c0_14, %c0_15] : memref<1x32xf32, #tpu.memory_space<vmem>>, vector<1x32xf32>
    %cst_16 = arith.constant dense<0.000000e+00> : vector<8x32xf32>
    %17 = tpu.matmul %14, %15, %cst_16 {dimension_numbers = #tpu.dot_dimension_numbers<[1], [0], [0], [1], [0, 0, 1, 1], [], []>} : vector<8x256xf32>, vector<256x32xf32>, vector<8x32xf32> -> vector<8x32xf32>
    %18 = vector.broadcast %16 : vector<1x32xf32> to vector<8x32xf32>
    %19 = arith.addf %17, %18 : vector<8x32xf32>
    %c0_17 = arith.constant 0 : index
    %c0_18 = arith.constant 0 : index
    %20 = vector.load %arg8[%c0_17, %c0_18] : memref<8x32xf32, #tpu.memory_space<vmem>>, vector<8x32xf32>
    tpu.vector_store %arg8[%c0_17, %c0_18], %19 {strides = array<i32>} : memref<8x32xf32, #tpu.memory_space<vmem>>, vector<8x32xf32>,
    return
  }
  func.func @transform_0(%arg0: i32) -> (i32, i32) {
    %c0_i32 = arith.constant 0 : i32
    %c0_i32_0 = arith.constant 0 : i32
    return %arg0, %c0_i32 : i32, i32
  }
  func.func @transform_1(%arg0: i32) -> (i32, i32) {
    %c0_i32 = arith.constant 0 : i32
    %c0_i32_0 = arith.constant 0 : i32
    %c0_i32_1 = arith.constant 0 : i32
    return %c0_i32, %c0_i32_0 : i32, i32
  }
  func.func @transform_2(%arg0: i32) -> (i32, i32) {
    %c0_i32 = arith.constant 0 : i32
    %c0_i32_0 = arith.constant 0 : i32
    %c0_i32_1 = arith.constant 0 : i32
    return %c0_i32, %c0_i32_0 : i32, i32
  }
  func.func @transform_3(%arg0: i32) -> (i32, i32) {
    %c0_i32 = arith.constant 0 : i32
    %c0_i32_0 = arith.constant 0 : i32
    %c0_i32_1 = arith.constant 0 : i32
    return %c0_i32, %c0_i32_0 : i32, i32
  }
  func.func @transform_4(%arg0: i32) -> (i32, i32) {
    %c0_i32 = arith.constant 0 : i32
    %c0_i32_0 = arith.constant 0 : i32
    %c0_i32_1 = arith.constant 0 : i32
    return %c0_i32, %c0_i32_0 : i32, i32
  }
  func.func @transform_5(%arg0: i32) -> (i32, i32) {
    %c0_i32 = arith.constant 0 : i32
    %c0_i32_0 = arith.constant 0 : i32
    %c0_i32_1 = arith.constant 0 : i32
    return %c0_i32, %c0_i32_0 : i32, i32
  }
  func.func @transform_6(%arg0: i32) -> (i32, i32) {
    %c0_i32 = arith.constant 0 : i32
    %c0_i32_0 = arith.constant 0 : i32
    %c0_i32_1 = arith.constant 0 : i32
    return %c0_i32, %c0_i32_0 : i32, i32
  }
  func.func @transform_7(%arg0: i32) -> (i32, i32) {
    %c0_i32 = arith.constant 0 : i32
    %c0_i32_0 = arith.constant 0 : i32
    return %arg0, %c0_i32 : i32, i32
  }
}

</mosaic_0001>

<llo_original>
// kernel: tpu_custom_call.1
$region0: #{tpu_custom_call.1}
  #allocation0 [shape = 'u32[]', space=smem, size = 0x4, offset = 0x4, fixed_abs, tag = 'smem constant byte address 0x4 - core index']
  #allocation1 [shape = 'u32[72,128]{1,0:T(1,128)}', space=vmem, size = 0x9000, scoped, tag = 'internal scratch']
  %s0 = inlined_call_operand.vmem [shape: f32[8,256], index: 0, kind: input, shape index: {}]
  %s1 = inlined_call_operand.hbm [shape: f32[256,256], index: 1, kind: input, shape index: {}]
  %s2 = inlined_call_operand.vmem [shape: f32[1,256], index: 2, kind: input, shape index: {}]
  %s3 = inlined_call_operand.hbm [shape: f32[256,256], index: 3, kind: input, shape index: {}]
  %s4 = inlined_call_operand.vmem [shape: f32[1,256], index: 4, kind: input, shape index: {}]
  %s5 = inlined_call_operand.vmem [shape: f32[256,32], index: 5, kind: input, shape index: {}]
  %s6 = inlined_call_operand.vmem [shape: f32[1,32], index: 6, kind: input, shape index: {}]
  %s7 = inlined_call_operand.hbm [shape: f32[8,32], index: 7, kind: output, shape index: {}]
  %s8 = sld [smem:[#allocation0]]
  $region46: #{tpu_custom_call.1} parent=0
    _
  %s10 = ssub.s32 1, %s8
  %s11 = scalar_select 0, %s10, %s8
  $region1: #{tpu_custom_call.1} parent=0
    #allocation2 [shape = 'u8[262144]{0}', space=vmem, size = 0x40000, scoped, tag = 'input window, operand 1, single buffered']
    #allocation3 [shape = 's32[1]{0}', space=sflag, size = 0x4, scoped, tag = 'scoped memory for tpu_custom_call.1']
    #allocation4 [shape = 's32[1]{0}', space=sflag, size = 0x4, scoped, tag = 'scoped memory for tpu_custom_call.1']
    #allocation5 [shape = 'u8[262144]{0}', space=vmem, size = 0x40000, scoped, tag = 'input window, operand 3, single buffered']
    #allocation6 [shape = 's32[1]{0}', space=sflag, size = 0x4, scoped, tag = 'scoped memory for tpu_custom_call.1']
    #allocation7 [shape = 'u8[4096]{0}', space=vmem, size = 0x1000, scoped, tag = 'output window, operand 0, single buffered']
    %12 = vsyncpa [#allocation3], 0
    %13 = vsyncpa [#allocation6], 0
    %14 = vsyncpa [#allocation4], 0
    // Predicated region
    $region2: #{tpu_custom_call.1} parent=1 // pred_check
      _
    $region3: #{tpu_custom_call.1} parent=1 // pred_check_branch
      %16 = sbr.rel (0) target = $region5
    $region4: #{tpu_custom_call.1} parent=1 // pred_region
      _
    $region5: #{tpu_custom_call.1} parent=1 // pred_fallthru
      _
    // Predicated region
    $region6: #{tpu_custom_call.1} parent=1 // pred_check
      _
    $region7: #{tpu_custom_call.1} parent=1 // pred_check_branch
      %18 = sbr.rel (0) target = $region9
    $region8: #{tpu_custom_call.1} parent=1 // pred_region
      %20 = vsyncadd [#allocation3], 0
      %s21 = sshll.u32 %s1, 4
      %s22 = int_to_ptr.hbm [resolvable:$true] %s21
      %s23 = sshll.u32 [#allocation2], 4
      %s24 = int_to_ptr.vmem [resolvable:$true] %s23
      %29 = dma.hbm_to_vmem [thread:$0]  %s22, 8192, %s24, [#allocation3], 256, 256, 16
    $region9: #{tpu_custom_call.1} parent=1 // pred_fallthru
      _
    // Predicated region
    $region10: #{tpu_custom_call.1} parent=1 // pred_check
      _
    $region11: #{tpu_custom_call.1} parent=1 // pred_check_branch
      %31 = sbr.rel (0) target = $region13
    $region12: #{tpu_custom_call.1} parent=1 // pred_region
      _
    $region13: #{tpu_custom_call.1} parent=1 // pred_fallthru
      _
    // Predicated region
    $region14: #{tpu_custom_call.1} parent=1 // pred_check
      _
    $region15: #{tpu_custom_call.1} parent=1 // pred_check_branch
      %33 = sbr.rel (0) target = $region17
    $region16: #{tpu_custom_call.1} parent=1 // pred_region
      %35 = vsyncadd [#allocation6], 0
      %s36 = sshll.u32 %s3, 4
      %s37 = int_to_ptr.hbm [resolvable:$true] %s36
      %s38 = sshll.u32 [#allocation5], 4
      %s39 = int_to_ptr.vmem [resolvable:$true] %s38
      %44 = dma.hbm_to_vmem [thread:$0]  %s37, 8192, %s39, [#allocation6], 256, 256, 16
    $region17: #{tpu_custom_call.1} parent=1 // pred_fallthru
      _
    // Predicated region
    $region18: #{tpu_custom_call.1} parent=1 // pred_check
      _
    $region19: #{tpu_custom_call.1} parent=1 // pred_check_branch
      %46 = sbr.rel (0) target = $region21
    $region20: #{tpu_custom_call.1} parent=1 // pred_region
      _
    $region21: #{tpu_custom_call.1} parent=1 // pred_fallthru
      _
    // Predicated region
    $region22: #{tpu_custom_call.1} parent=1 // pred_check
      _
    $region23: #{tpu_custom_call.1} parent=1 // pred_check_branch
      %48 = sbr.rel (0) target = $region25
    $region24: #{tpu_custom_call.1} parent=1 // pred_region
      _
    $region25: #{tpu_custom_call.1} parent=1 // pred_fallthru
      _
    // Predicated region
    $region26: #{tpu_custom_call.1} parent=1 // pred_check
      _
    $region27: #{tpu_custom_call.1} parent=1 // pred_check_branch
      %50 = sbr.rel (0) target = $region29
    $region28: #{tpu_custom_call.1} parent=1 // pred_region
      _
    $region29: #{tpu_custom_call.1} parent=1 // pred_fallthru
      _
    // Predicated region
    $region30: #{tpu_custom_call.1} parent=1 // pred_check
      _
    $region31: #{tpu_custom_call.1} parent=1 // pred_check_branch
      %52 = sbr.rel (0) target = $region33
    $region32: #{tpu_custom_call.1} parent=1 // pred_region
      %54 = dma.done [#allocation3], 8192
    $region33: #{tpu_custom_call.1} parent=1 // pred_fallthru
      _
    // Predicated region
    $region34: #{tpu_custom_call.1} parent=1 // pred_check
      _
    $region35: #{tpu_custom_call.1} parent=1 // pred_check_branch
      %56 = sbr.rel (0) target = $region37
    $region36: #{tpu_custom_call.1} parent=1 // pred_region
      %58 = dma.done [#allocation6], 8192
    $region37: #{tpu_custom_call.1} parent=1 // pred_fallthru
      _
    %v59 = vld [vmem:[%s0] sm:$0xff]
    %v60 = vld [vmem:[%s0 + $0x8] sm:$0xff]
    %v61 = vld [vmem:[#allocation2] sm:$0xff]
    %v62 = vld [vmem:[#allocation2 + $0x8] sm:$0xff]
    %v63 = vld [vmem:[#allocation2 + $0x10] sm:$0xff]
    %v64 = vld [vmem:[#allocation2 + $0x18] sm:$0xff]
    %v65 = vld [vmem:[#allocation2 + $0x20] sm:$0xff]
    %v66 = vld [vmem:[#allocation2 + $0x28] sm:$0xff]
    %v67 = vld [vmem:[#allocation2 + $0x30] sm:$0xff]
    %v68 = vld [vmem:[#allocation2 + $0x38] sm:$0xff]
    %v69 = vld [vmem:[#allocation2 + $0x40] sm:$0xff]
    %v70 = vld [vmem:[#allocation2 + $0x48] sm:$0xff]
    %v71 = vld [vmem:[#allocation2 + $0x50] sm:$0xff]
    %v72 = vld [vmem:[#allocation2 + $0x58] sm:$0xff]
    %v73 = vld [vmem:[#allocation2 + $0x60] sm:$0xff]
    %v74 = vld [vmem:[#allocation2 + $0x68] sm:$0xff]
    %v75 = vld [vmem:[#allocation2 + $0x70] sm:$0xff]
    %v76 = vld [vmem:[#allocation2 + $0x78] sm:$0xff]
    %v77 = vld [vmem:[#allocation2 + $0x80] sm:$0xff]
    %v78 = vld [vmem:[#allocation2 + $0x88] sm:$0xff]
    %v79 = vld [vmem:[#allocation2 + $0x90] sm:$0xff]
    %v80 = vld [vmem:[#allocation2 + $0x98] sm:$0xff]
    %v81 = vld [vmem:[#allocation2 + $0xa0] sm:$0xff]
    %v82 = vld [vmem:[#allocation2 + $0xa8] sm:$0xff]
    %v83 = vld [vmem:[#allocation2 + $0xb0] sm:$0xff]
    %v84 = vld [vmem:[#allocation2 + $0xb8] sm:$0xff]
    %v85 = vld [vmem:[#allocation2 + $0xc0] sm:$0xff]
    %v86 = vld [vmem:[#allocation2 + $0xc8] sm:$0xff]
    %v87 = vld [vmem:[#allocation2 + $0xd0] sm:$0xff]
    %v88 = vld [vmem:[#allocation2 + $0xd8] sm:$0xff]
    %v89 = vld [vmem:[#allocation2 + $0xe0] sm:$0xff]
    %v90 = vld [vmem:[#allocation2 + $0xe8] sm:$0xff]
    %v91 = vld [vmem:[#allocation2 + $0xf0] sm:$0xff]
    %v92 = vld [vmem:[#allocation2 + $0xf8] sm:$0xff]
    %v93 = vld [vmem:[#allocation2 + $0x100] sm:$0xff]
    %v94 = vld [vmem:[#allocation2 + $0x108] sm:$0xff]
    %v95 = vld [vmem:[#allocation2 + $0x110] sm:$0xff]
    %v96 = vld [vmem:[#allocation2 + $0x118] sm:$0xff]
    %v97 = vld [vmem:[#allocation2 + $0x120] sm:$0xff]
    %v98 = vld [vmem:[#allocation2 + $0x128] sm:$0xff]
    %v99 = vld [vmem:[#allocation2 + $0x130] sm:$0xff]
    %v100 = vld [vmem:[#allocation2 + $0x138] sm:$0xff]
    %v101 = vld [vmem:[#allocation2 + $0x140] sm:$0xff]
    %v102 = vld [vmem:[#allocation2 + $0x148] sm:$0xff]
    %v103 = vld [vmem:[#allocation2 + $0x150] sm:$0xff]
    %v104 = vld [vmem:[#allocation2 + $0x158] sm:$0xff]
    %v105 = vld [vmem:[#allocation2 + $0x160] sm:$0xff]
    %v106 = vld [vmem:[#allocation2 + $0x168] sm:$0xff]
    %v107 = vld [vmem:[#allocation2 + $0x170] sm:$0xff]
    %v108 = vld [vmem:[#allocation2 + $0x178] sm:$0xff]
    %v109 = vld [vmem:[#allocation2 + $0x180] sm:$0xff]
    %v110 = vld [vmem:[#allocation2 + $0x188] sm:$0xff]
    %v111 = vld [vmem:[#allocation2 + $0x190] sm:$0xff]
    %v112 = vld [vmem:[#allocation2 + $0x198] sm:$0xff]
    %v113 = vld [vmem:[#allocation2 + $0x1a0] sm:$0xff]
    %v114 = vld [vmem:[#allocation2 + $0x1a8] sm:$0xff]
    %v115 = vld [vmem:[#allocation2 + $0x1b0] sm:$0xff]
    %v116 = vld [vmem:[#allocation2 + $0x1b8] sm:$0xff]
    %v117 = vld [vmem:[#allocation2 + $0x1c0] sm:$0xff]
    %v118 = vld [vmem:[#allocation2 + $0x1c8] sm:$0xff]
    %v119 = vld [vmem:[#allocation2 + $0x1d0] sm:$0xff]
    %v120 = vld [vmem:[#allocation2 + $0x1d8] sm:$0xff]
    %v121 = vld [vmem:[#allocation2 + $0x1e0] sm:$0xff]
    %v122 = vld [vmem:[#allocation2 + $0x1e8] sm:$0xff]
    %v123 = vld [vmem:[#allocation2 + $0x1f0] sm:$0xff]
    %v124 = vld [vmem:[#allocation2 + $0x1f8] sm:$0xff]
    %v125 = vld [vmem:[%s2] sm:$0x3]
    %v127 = vperm.slane %v125, 0
    %v128 = vperm.slane %v125, 1
    %131 = vmatpush.msra.mxu0 %v91
    %132 = vmatpush.msra.mxu0 %v89
    %133 = vmatpush.msra.mxu0 %v87
    %134 = vmatpush.msra.mxu0 %v85
    %135 = vmatpush.msra.mxu0 %v83
    %136 = vmatpush.msra.mxu0 %v81
    %137 = vmatpush.msra.mxu0 %v79
    %138 = vmatpush.msra.mxu0 %v77
    %139 = vmatpush.msra.mxu0 %v75
    %140 = vmatpush.msra.mxu0 %v73
    %141 = vmatpush.msra.mxu0 %v71
    %142 = vmatpush.msra.mxu0 %v69
    %143 = vmatpush.msra.mxu0 %v67
    %144 = vmatpush.msra.mxu0 %v65
    %145 = vmatpush.msra.mxu0 %v63
    %146 = vmatpush.msra.mxu0 %v61
    %147 = vmatmul.f32.gmra.mxu0 %v59
    %v148 = vpop.f32.mrf.mxu0
    %v149 = vadd.f32 %v127, %v148
    %150 = vdwg.mxu0
    %151 = vmatpush.msra.mxu0 %v123
    %152 = vmatpush.msra.mxu0 %v121
    %153 = vmatpush.msra.mxu0 %v119
    %154 = vmatpush.msra.mxu0 %v117
    %155 = vmatpush.msra.mxu0 %v115
    %156 = vmatpush.msra.mxu0 %v113
    %157 = vmatpush.msra.mxu0 %v111
    %158 = vmatpush.msra.mxu0 %v109
    %159 = vmatpush.msra.mxu0 %v107
    %160 = vmatpush.msra.mxu0 %v105
    %161 = vmatpush.msra.mxu0 %v103
    %162 = vmatpush.msra.mxu0 %v101
    %163 = vmatpush.msra.mxu0 %v99
    %164 = vmatpush.msra.mxu0 %v97
    %165 = vmatpush.msra.mxu0 %v95
    %166 = vmatpush.msra.mxu0 %v93
    %167 = vmatmul.f32.gmra.mxu0 %v60
    %v168 = vpop.f32.mrf.mxu0
    %v169 = vadd.f32 %v149, %v168
    %170 = vdwg.mxu0
    %171 = vmatpush.msra.mxu0 %v92
    %172 = vmatpush.msra.mxu0 %v90
    %173 = vmatpush.msra.mxu0 %v88
    %174 = vmatpush.msra.mxu0 %v86
    %175 = vmatpush.msra.mxu0 %v84
    %176 = vmatpush.msra.mxu0 %v82
    %177 = vmatpush.msra.mxu0 %v80
    %178 = vmatpush.msra.mxu0 %v78
    %179 = vmatpush.msra.mxu0 %v76
    %180 = vmatpush.msra.mxu0 %v74
    %181 = vmatpush.msra.mxu0 %v72
    %182 = vmatpush.msra.mxu0 %v70
    %183 = vmatpush.msra.mxu0 %v68
    %184 = vmatpush.msra.mxu0 %v66
    %185 = vmatpush.msra.mxu0 %v64
    %186 = vmatpush.msra.mxu0 %v62
    %187 = vmatmul.f32.gmra.mxu0 %v59
    %v188 = vpop.f32.mrf.mxu0
    %v189 = vadd.f32 %v128, %v188
    %190 = vdwg.mxu0
    %191 = vmatpush.msra.mxu0 %v124
    %192 = vmatpush.msra.mxu0 %v122
    %193 = vmatpush.msra.mxu0 %v120
    %194 = vmatpush.msra.mxu0 %v118
    %195 = vmatpush.msra.mxu0 %v116
    %196 = vmatpush.msra.mxu0 %v114
    %197 = vmatpush.msra.mxu0 %v112
    %198 = vmatpush.msra.mxu0 %v110
    %199 = vmatpush.msra.mxu0 %v108
    %200 = vmatpush.msra.mxu0 %v106
    %201 = vmatpush.msra.mxu0 %v104
    %202 = vmatpush.msra.mxu0 %v102
    %203 = vmatpush.msra.mxu0 %v100
    %204 = vmatpush.msra.mxu0 %v98
    %205 = vmatpush.msra.mxu0 %v96
    %206 = vmatpush.msra.mxu0 %v94
    %207 = vmatmul.f32.gmra.mxu0 %v60
    %v208 = vpop.f32.mrf.mxu0
    %v209 = vadd.f32 %v189, %v208
    %210 = vdwg.mxu0
    %v211 = vmax.f32 %v169, 0.0
    %v212 = vmax.f32 %v209, 0.0
    %v213 = vld [vmem:[#allocation5] sm:$0xff]
    %v214 = vld [vmem:[#allocation5 + $0x8] sm:$0xff]
    %v215 = vld [vmem:[#allocation5 + $0x10] sm:$0xff]
    %v216 = vld [vmem:[#allocation5 + $0x18] sm:$0xff]
    %v217 = vld [vmem:[#allocation5 + $0x20] sm:$0xff]
    %v218 = vld [vmem:[#allocation5 + $0x28] sm:$0xff]
    %v219 = vld [vmem:[#allocation5 + $0x30] sm:$0xff]
    %v220 = vld [vmem:[#allocation5 + $0x38] sm:$0xff]
    %v221 = vld [vmem:[#allocation5 + $0x40] sm:$0xff]
    %v222 = vld [vmem:[#allocation5 + $0x48] sm:$0xff]
    %v223 = vld [vmem:[#allocation5 + $0x50] sm:$0xff]
    %v224 = vld [vmem:[#allocation5 + $0x58] sm:$0xff]
    %v225 = vld [vmem:[#allocation5 + $0x60] sm:$0xff]
    %v226 = vld [vmem:[#allocation5 + $0x68] sm:$0xff]
    %v227 = vld [vmem:[#allocation5 + $0x70] sm:$0xff]
    %v228 = vld [vmem:[#allocation5 + $0x78] sm:$0xff]
    %v229 = vld [vmem:[#allocation5 + $0x80] sm:$0xff]
    %v230 = vld [vmem:[#allocation5 + $0x88] sm:$0xff]
    %v231 = vld [vmem:[#allocation5 + $0x90] sm:$0xff]
    %v232 = vld [vmem:[#allocation5 + $0x98] sm:$0xff]
    %v233 = vld [vmem:[#allocation5 + $0xa0] sm:$0xff]
    %v234 = vld [vmem:[#allocation5 + $0xa8] sm:$0xff]
    %v235 = vld [vmem:[#allocation5 + $0xb0] sm:$0xff]
    %v236 = vld [vmem:[#allocation5 + $0xb8] sm:$0xff]
    %v237 = vld [vmem:[#allocation5 + $0xc0] sm:$0xff]
    %v238 = vld [vmem:[#allocation5 + $0xc8] sm:$0xff]
    %v239 = vld [vmem:[#allocation5 + $0xd0] sm:$0xff]
    %v240 = vld [vmem:[#allocation5 + $0xd8] sm:$0xff]
    %v241 = vld [vmem:[#allocation5 + $0xe0] sm:$0xff]
    %v242 = vld [vmem:[#allocation5 + $0xe8] sm:$0xff]
    %v243 = vld [vmem:[#allocation5 + $0xf0] sm:$0xff]
    %v244 = vld [vmem:[#allocation5 + $0xf8] sm:$0xff]
    %v245 = vld [vmem:[#allocation5 + $0x100] sm:$0xff]
    %v246 = vld [vmem:[#allocation5 + $0x108] sm:$0xff]
    %v247 = vld [vmem:[#allocation5 + $0x110] sm:$0xff]
    %v248 = vld [vmem:[#allocation5 + $0x118] sm:$0xff]
    %v249 = vld [vmem:[#allocation5 + $0x120] sm:$0xff]
    %v250 = vld [vmem:[#allocation5 + $0x128] sm:$0xff]
    %v251 = vld [vmem:[#allocation5 + $0x130] sm:$0xff]
    %v252 = vld [vmem:[#allocation5 + $0x138] sm:$0xff]
    %v253 = vld [vmem:[#allocation5 + $0x140] sm:$0xff]
    %v254 = vld [vmem:[#allocation5 + $0x148] sm:$0xff]
    %v255 = vld [vmem:[#allocation5 + $0x150] sm:$0xff]
    %v256 = vld [vmem:[#allocation5 + $0x158] sm:$0xff]
    %v257 = vld [vmem:[#allocation5 + $0x160] sm:$0xff]
    %v258 = vld [vmem:[#allocation5 + $0x168] sm:$0xff]
    %v259 = vld [vmem:[#allocation5 + $0x170] sm:$0xff]
    %v260 = vld [vmem:[#allocation5 + $0x178] sm:$0xff]
    %v261 = vld [vmem:[#allocation5 + $0x180] sm:$0xff]
    %v262 = vld [vmem:[#allocation5 + $0x188] sm:$0xff]
    %v263 = vld [vmem:[#allocation5 + $0x190] sm:$0xff]
    %v264 = vld [vmem:[#allocation5 + $0x198] sm:$0xff]
    %v265 = vld [vmem:[#allocation5 + $0x1a0] sm:$0xff]
    %v266 = vld [vmem:[#allocation5 + $0x1a8] sm:$0xff]
    %v267 = vld [vmem:[#allocation5 + $0x1b0] sm:$0xff]
    %v268 = vld [vmem:[#allocation5 + $0x1b8] sm:$0xff]
    %v269 = vld [vmem:[#allocation5 + $0x1c0] sm:$0xff]
    %v270 = vld [vmem:[#allocation5 + $0x1c8] sm:$0xff]
    %v271 = vld [vmem:[#allocation5 + $0x1d0] sm:$0xff]
    %v272 = vld [vmem:[#allocation5 + $0x1d8] sm:$0xff]
    %v273 = vld [vmem:[#allocation5 + $0x1e0] sm:$0xff]
    %v274 = vld [vmem:[#allocation5 + $0x1e8] sm:$0xff]
    %v275 = vld [vmem:[#allocation5 + $0x1f0] sm:$0xff]
    %v276 = vld [vmem:[#allocation5 + $0x1f8] sm:$0xff]
    %v277 = vld [vmem:[%s4] sm:$0x3]
    %v279 = vperm.slane %v277, 0
    %v280 = vperm.slane %v277, 1
    %283 = vmatpush.msra.mxu0 %v243
    %284 = vmatpush.msra.mxu0 %v241
    %285 = vmatpush.msra.mxu0 %v239
    %286 = vmatpush.msra.mxu0 %v237
    %287 = vmatpush.msra.mxu0 %v235
    %288 = vmatpush.msra.mxu0 %v233
    %289 = vmatpush.msra.mxu0 %v231
    %290 = vmatpush.msra.mxu0 %v229
    %291 = vmatpush.msra.mxu0 %v227
    %292 = vmatpush.msra.mxu0 %v225
    %293 = vmatpush.msra.mxu0 %v223
    %294 = vmatpush.msra.mxu0 %v221
    %295 = vmatpush.msra.mxu0 %v219
    %296 = vmatpush.msra.mxu0 %v217
    %297 = vmatpush.msra.mxu0 %v215
    %298 = vmatpush.msra.mxu0 %v213
    %299 = vmatmul.f32.gmra.mxu0 %v211
    %v300 = vpop.f32.mrf.mxu0
    %v301 = vadd.f32 %v279, %v300
    %302 = vdwg.mxu0
    %303 = vmatpush.msra.mxu0 %v275
    %304 = vmatpush.msra.mxu0 %v273
    %305 = vmatpush.msra.mxu0 %v271
    %306 = vmatpush.msra.mxu0 %v269
    %307 = vmatpush.msra.mxu0 %v267
    %308 = vmatpush.msra.mxu0 %v265
    %309 = vmatpush.msra.mxu0 %v263
    %310 = vmatpush.msra.mxu0 %v261
    %311 = vmatpush.msra.mxu0 %v259
    %312 = vmatpush.msra.mxu0 %v257
    %313 = vmatpush.msra.mxu0 %v255
    %314 = vmatpush.msra.mxu0 %v253
    %315 = vmatpush.msra.mxu0 %v251
    %316 = vmatpush.msra.mxu0 %v249
    %317 = vmatpush.msra.mxu0 %v247
    %318 = vmatpush.msra.mxu0 %v245
    %319 = vmatmul.f32.gmra.mxu0 %v212
    %v320 = vpop.f32.mrf.mxu0
    %v321 = vadd.f32 %v301, %v320
    %322 = vdwg.mxu0
    %323 = vmatpush.msra.mxu0 %v244
    %324 = vmatpush.msra.mxu0 %v242
    %325 = vmatpush.msra.mxu0 %v240
    %326 = vmatpush.msra.mxu0 %v238
    %327 = vmatpush.msra.mxu0 %v236
    %328 = vmatpush.msra.mxu0 %v234
    %329 = vmatpush.msra.mxu0 %v232
    %330 = vmatpush.msra.mxu0 %v230
    %331 = vmatpush.msra.mxu0 %v228
    %332 = vmatpush.msra.mxu0 %v226
    %333 = vmatpush.msra.mxu0 %v224
    %334 = vmatpush.msra.mxu0 %v222
    %335 = vmatpush.msra.mxu0 %v220
    %336 = vmatpush.msra.mxu0 %v218
    %337 = vmatpush.msra.mxu0 %v216
    %338 = vmatpush.msra.mxu0 %v214
    %339 = vmatmul.f32.gmra.mxu0 %v211
    %v340 = vpop.f32.mrf.mxu0
    %v341 = vadd.f32 %v280, %v340
    %342 = vdwg.mxu0
    %343 = vmatpush.msra.mxu0 %v276
    %344 = vmatpush.msra.mxu0 %v274
    %345 = vmatpush.msra.mxu0 %v272
    %346 = vmatpush.msra.mxu0 %v270
    %347 = vmatpush.msra.mxu0 %v268
    %348 = vmatpush.msra.mxu0 %v266
    %349 = vmatpush.msra.mxu0 %v264
    %350 = vmatpush.msra.mxu0 %v262
    %351 = vmatpush.msra.mxu0 %v260
    %352 = vmatpush.msra.mxu0 %v258
    %353 = vmatpush.msra.mxu0 %v256
    %354 = vmatpush.msra.mxu0 %v254
    %355 = vmatpush.msra.mxu0 %v252
    %356 = vmatpush.msra.mxu0 %v250
    %357 = vmatpush.msra.mxu0 %v248
    %358 = vmatpush.msra.mxu0 %v246
    %359 = vmatmul.f32.gmra.mxu0 %v212
    %v360 = vpop.f32.mrf.mxu0
    %v361 = vadd.f32 %v341, %v360
    %362 = vdwg.mxu0
    %v363 = vmax.f32 %v321, 0.0
    %v364 = vmax.f32 %v361, 0.0
    %v365 = vld [vmem:[%s5] sm:$0xff]
    %v366 = vld [vmem:[%s5 + $0x8] sm:$0xff]
    %v367 = vld [vmem:[%s5 + $0x10] sm:$0xff]
    %v368 = vld [vmem:[%s5 + $0x18] sm:$0xff]
    %v369 = vld [vmem:[%s5 + $0x20] sm:$0xff]
    %v370 = vld [vmem:[%s5 + $0x28] sm:$0xff]
    %v371 = vld [vmem:[%s5 + $0x30] sm:$0xff]
    %v372 = vld [vmem:[%s5 + $0x38] sm:$0xff]
    %v373 = vld [vmem:[%s5 + $0x40] sm:$0xff]
    %v374 = vld [vmem:[%s5 + $0x48] sm:$0xff]
    %v375 = vld [vmem:[%s5 + $0x50] sm:$0xff]
    %v376 = vld [vmem:[%s5 + $0x58] sm:$0xff]
    %v377 = vld [vmem:[%s5 + $0x60] sm:$0xff]
    %v378 = vld [vmem:[%s5 + $0x68] sm:$0xff]
    %v379 = vld [vmem:[%s5 + $0x70] sm:$0xff]
    %v380 = vld [vmem:[%s5 + $0x78] sm:$0xff]
    %v381 = vld [vmem:[%s5 + $0x80] sm:$0xff]
    %v382 = vld [vmem:[%s5 + $0x88] sm:$0xff]
    %v383 = vld [vmem:[%s5 + $0x90] sm:$0xff]
    %v384 = vld [vmem:[%s5 + $0x98] sm:$0xff]
    %v385 = vld [vmem:[%s5 + $0xa0] sm:$0xff]
    %v386 = vld [vmem:[%s5 + $0xa8] sm:$0xff]
    %v387 = vld [vmem:[%s5 + $0xb0] sm:$0xff]
    %v388 = vld [vmem:[%s5 + $0xb8] sm:$0xff]
    %v389 = vld [vmem:[%s5 + $0xc0] sm:$0xff]
    %v390 = vld [vmem:[%s5 + $0xc8] sm:$0xff]
    %v391 = vld [vmem:[%s5 + $0xd0] sm:$0xff]
    %v392 = vld [vmem:[%s5 + $0xd8] sm:$0xff]
    %v393 = vld [vmem:[%s5 + $0xe0] sm:$0xff]
    %v394 = vld [vmem:[%s5 + $0xe8] sm:$0xff]
    %v395 = vld [vmem:[%s5 + $0xf0] sm:$0xff]
    %v396 = vld [vmem:[%s5 + $0xf8] sm:$0xff]
    %v397 = vld [vmem:[%s6] sm:$0x1]
    %v399 = vperm.slane %v397, 0
    %401 = vmatpush.msra.mxu0 %v380
    %402 = vmatpush.msra.mxu0 %v379
    %403 = vmatpush.msra.mxu0 %v378
    %404 = vmatpush.msra.mxu0 %v377
    %405 = vmatpush.msra.mxu0 %v376
    %406 = vmatpush.msra.mxu0 %v375
    %407 = vmatpush.msra.mxu0 %v374
    %408 = vmatpush.msra.mxu0 %v373
    %409 = vmatpush.msra.mxu0 %v372
    %410 = vmatpush.msra.mxu0 %v371
    %411 = vmatpush.msra.mxu0 %v370
    %412 = vmatpush.msra.mxu0 %v369
    %413 = vmatpush.msra.mxu0 %v368
    %414 = vmatpush.msra.mxu0 %v367
    %415 = vmatpush.msra.mxu0 %v366
    %416 = vmatpush.msra.mxu0 %v365
    %417 = vmatmul.f32.gmra.mxu0 %v363
    %v418 = vpop.f32.mrf.mxu0
    %v419 = vadd.f32 %v399, %v418
    %420 = vdwg.mxu0
    %421 = vmatpush.msra.mxu0 %v396
    %422 = vmatpush.msra.mxu0 %v395
    %423 = vmatpush.msra.mxu0 %v394
    %424 = vmatpush.msra.mxu0 %v393
    %425 = vmatpush.msra.mxu0 %v392
    %426 = vmatpush.msra.mxu0 %v391
    %427 = vmatpush.msra.mxu0 %v390
    %428 = vmatpush.msra.mxu0 %v389
    %429 = vmatpush.msra.mxu0 %v388
    %430 = vmatpush.msra.mxu0 %v387
    %431 = vmatpush.msra.mxu0 %v386
    %432 = vmatpush.msra.mxu0 %v385
    %433 = vmatpush.msra.mxu0 %v384
    %434 = vmatpush.msra.mxu0 %v383
    %435 = vmatpush.msra.mxu0 %v382
    %436 = vmatpush.msra.mxu0 %v381
    %437 = vmatmul.f32.gmra.mxu0 %v364
    %v438 = vpop.f32.mrf.mxu0
    %v439 = vadd.f32 %v419, %v438
    %440 = vdwg.mxu0
    %vm441 = vcmask 261120
    %442 = vst.msk [vmem:[#allocation7] sm:$0xff] %vm441, %v439
    // Predicated region
    $region38: #{tpu_custom_call.1} parent=1 // pred_check
      _
    $region39: #{tpu_custom_call.1} parent=1 // pred_check_branch
      %444 = sbr.rel (0) target = $region41
    $region40: #{tpu_custom_call.1} parent=1 // pred_region
      %446 = vsyncadd [#allocation4], 0
      %s448 = sshll.u32 [#allocation7], 4
      %s449 = int_to_ptr.vmem [resolvable:$true] %s448
      %s450 = sshll.u32 %s7, 4
      %s451 = int_to_ptr.hbm [resolvable:$true] %s450
      %453 = dma.vmem_to_hbm [thread:$0]  %s449, 128, %s451, [#allocation4]
    $region41: #{tpu_custom_call.1} parent=1 // pred_fallthru
      _
    // Predicated region
    $region42: #{tpu_custom_call.1} parent=1 // pred_check
      _
    $region43: #{tpu_custom_call.1} parent=1 // pred_check_branch
      %455 = sbr.rel (0) target = $region45
    $region44: #{tpu_custom_call.1} parent=1 // pred_region
      %457 = dma.done [#allocation4], 128
    $region45: #{tpu_custom_call.1} parent=1 // pred_fallthru
      _
    %458 = vsyncpa [#allocation3], 1
    %459 = vsyncpa [#allocation6], 1
    %460 = vsyncpa [#allocation4], 1

</llo_original>
